<compile_context>
chip_gen: v7x
topology: tpu7x:2x2x1
jax: 0.10.0
libtpu: 0.0.40
codegen_flags: <defaults>
</compile_context>

<pallas_src>
import functools

import jax
import jax.numpy as jnp
from jax import lax
from jax.experimental import pallas as pl
from jax.experimental.pallas import tpu as pltpu


def _attention_kernel(x_ref, wqkv_ref, bqkv_ref, wproj_ref, bproj_ref,
                      o_ref, *rest,
                      num_heads, matmul_dtype, return_attention, batch_block):
    # x_ref:     (batch_block, N, C)
    # wqkv_ref:  (C, 3C)  pre-transposed + pre-cast, Q columns pre-scaled
    # bqkv_ref:  (1, 3C)  f32, Q slice pre-scaled
    # wproj_ref: (C, C)   pre-transposed + pre-cast
    # bproj_ref: (1, C)   f32
    # o_ref:     (batch_block, N, C)
    # rest: [attn_ref (batch_block, H, N, N)] if return_attention, then ctx scratch.
    if return_attention:
        attn_ref, ctx_ref = rest
    else:
        (ctx_ref,) = rest

    _, N, C = x_ref.shape
    H = num_heads
    Dh = C // H
    M = batch_block * N

    # Weights/biases: constant index_map + single buffer -> loaded once, plain VMEM reads.
    wqkv = wqkv_ref[...]            # (C, 3C) matmul_dtype
    wproj = wproj_ref[...]          # (C, C)  matmul_dtype
    bqkv = bqkv_ref[...]            # (1, 3C) f32
    bproj = bproj_ref[...]          # (1, C)  f32

    # ONE lane-dense qkv projection for all rows of the block (MXU M dim = batch_block*N).
    x2d = x_ref[...].reshape(M, C).astype(matmul_dtype)
    qkv = jnp.dot(x2d, wqkv, preferred_element_type=jnp.float32) + bqkv     # (M, 3C) f32
    qkv_mm = qkv.astype(matmul_dtype)   # single lane-dense cast shared by all heads

    for bb in range(batch_block):                 # static unroll over rows in the block
        r0 = bb * N
        for h in range(H):                        # all heads fused in one grid step
            q = qkv_mm[r0:r0 + N, h * Dh:(h + 1) * Dh]                 # pre-scaled
            k = qkv_mm[r0:r0 + N, C + h * Dh:C + (h + 1) * Dh]
            v = qkv_mm[r0:r0 + N, 2 * C + h * Dh:2 * C + (h + 1) * Dh]
            # q @ k^T without an in-kernel transpose: contract the head dim of both.
            s = lax.dot_general(q, k,
                                dimension_numbers=(((1,), (1,)), ((), ())),
                                preferred_element_type=jnp.float32)    # (N, N) f32
            s = s - jnp.max(s, axis=-1, keepdims=True)
            p = jnp.exp(s)
            # EUP reciprocal + multiply instead of a VALU divide.
            attn = p * pl.reciprocal(jnp.sum(p, axis=-1, keepdims=True), approx=True)
            if return_attention:
                attn_ref[bb, h] = attn.astype(attn_ref.dtype)
            ctx = jnp.dot(attn.astype(matmul_dtype), v,
                          preferred_element_type=jnp.float32)          # (N, Dh) f32
            # Per-head write into VMEM scratch: bounds live ranges, no concat relayout.
            ctx_ref[r0:r0 + N, h * Dh:(h + 1) * Dh] = ctx.astype(ctx_ref.dtype)

    # ONE lane-dense output projection over the whole block, lane-dense store.
    out = jnp.dot(ctx_ref[...], wproj, preferred_element_type=jnp.float32) + bproj
    # TODO(synk): attn_drop / proj_drop omitted — nn.Dropout is identity at p=0.0 / eval.
    o_ref[...] = out.reshape(batch_block, N, C).astype(o_ref.dtype)


def attention_forward(x, qkv_weight, qkv_bias, proj_weight, proj_bias, *,
                      num_heads, return_attention=False, matmul_dtype=None,
                      batch_block=1):
    """Pallas implementation of Attention.forward.

    x:           (B, N, C)
    qkv_weight:  (3C, C)   PyTorch nn.Linear convention (out, in)
    qkv_bias:    (3C,)
    proj_weight: (C, C)
    proj_bias:   (C,)
    """
    B, N, C = x.shape
    assert C % num_heads == 0
    assert B % batch_block == 0
    Dh = C // num_heads
    scale = float(Dh) ** -0.5
    if matmul_dtype is None:
        matmul_dtype = x.dtype
    matmul_dtype = jnp.dtype(matmul_dtype)

    # Fold the attention scale into the Q columns of the qkv projection (and bias):
    # removes H per-row (N, Dh) multiplies inside the kernel.
    scale_vec = jnp.concatenate([
        jnp.full((C,), scale, dtype=jnp.float32),
        jnp.ones((2 * C,), dtype=jnp.float32)])
    # Pre-transpose nn.Linear weights ONCE and pre-cast to matmul_dtype in the wrapper.
    wqkv_t = (jnp.transpose(qkv_weight).astype(jnp.float32)
              * scale_vec[None, :]).astype(matmul_dtype)               # (C, 3C)
    wproj_t = jnp.transpose(proj_weight).astype(matmul_dtype)          # (C, C)
    bqkv2 = (qkv_bias.astype(jnp.float32) * scale_vec).reshape(1, 3 * C)
    bproj2 = proj_bias.reshape(1, C).astype(jnp.float32)

    kernel = functools.partial(
        _attention_kernel, num_heads=num_heads, matmul_dtype=matmul_dtype,
        return_attention=return_attention, batch_block=batch_block)

    grid = (B // batch_block,)
    x_spec = pl.BlockSpec((batch_block, N, C), lambda b: (b, 0, 0))
    # Constant index_map + single buffer: weights DMA'd once, not double-buffered.
    w_specs = [
        pl.BlockSpec((C, 3 * C), lambda b: (0, 0), pipeline_mode=pl.Buffered(1)),
        pl.BlockSpec((1, 3 * C), lambda b: (0, 0), pipeline_mode=pl.Buffered(1)),
        pl.BlockSpec((C, C), lambda b: (0, 0), pipeline_mode=pl.Buffered(1)),
        pl.BlockSpec((1, C), lambda b: (0, 0), pipeline_mode=pl.Buffered(1)),
    ]
    out_spec = pl.BlockSpec((batch_block, N, C), lambda b: (b, 0, 0))

    if return_attention:
        # Attention map emitted in the input dtype (not f32) to halve writeback bytes.
        out_shape = (jax.ShapeDtypeStruct((B, N, C), x.dtype),
                     jax.ShapeDtypeStruct((B, num_heads, N, N), x.dtype))
        out_specs = (out_spec,
                     pl.BlockSpec((batch_block, num_heads, N, N),
                                  lambda b: (b, 0, 0, 0)))
    else:
        out_shape = jax.ShapeDtypeStruct((B, N, C), x.dtype)
        out_specs = out_spec

    scratch_shapes = [pltpu.VMEM((batch_block * N, C), matmul_dtype)]

    # Explicit (generous but bounded) scoped-VMEM budget.
    x_item = jnp.dtype(x.dtype).itemsize
    mm_item = matmul_dtype.itemsize
    w_bytes = (3 * C * C + C * C) * mm_item + (3 * C + C) * 4            # single-buffered
    io_bytes = 2 * 2 * batch_block * N * C * x_item                      # x + out, 2 bufs
    attn_bytes = (2 * batch_block * num_heads * N * N * x_item
                  if return_attention else 0)
    interm_bytes = batch_block * N * 3 * C * (4 + mm_item) + 3 * N * N * 4
    scratch_bytes = batch_block * N * C * mm_item
    est = w_bytes + io_bytes + attn_bytes + interm_bytes + scratch_bytes
    vmem_limit = max(32 * 1024 * 1024, min(64 * 1024 * 1024, 2 * est + (4 << 20)))

    flops = 8 * B * N * C * C + 4 * B * N * N * C
    transcendentals = B * num_heads * N * N
    bytes_accessed = (2 * B * N * C * x_item
                      + (3 * C * C + C * C) * mm_item + (3 * C + C) * 4
                      + (B * num_heads * N * N * x_item if return_attention else 0))
    cost = pl.CostEstimate(flops=int(flops),
                           transcendentals=int(transcendentals),
                           bytes_accessed=int(bytes_accessed))

    return pl.pallas_call(
        kernel,
        out_shape=out_shape,
        grid_spec=pltpu.PrefetchScalarGridSpec(
            num_scalar_prefetch=0,
            grid=grid,
            in_specs=[x_spec] + w_specs,
            out_specs=out_specs,
            scratch_shapes=scratch_shapes),
        compiler_params=pltpu.CompilerParams(
            dimension_semantics=("parallel",),
            vmem_limit_bytes=int(vmem_limit)),
        cost_estimate=cost,
    )(x, wqkv_t, bqkv2, wproj_t, bproj2)


def attention_ref(x, qkv_weight, qkv_bias, proj_weight, proj_bias, *,
                  num_heads, return_attention=False):
    """Pure-JAX reference (high-precision einsums)."""
    B, N, C = x.shape
    Dh = C // num_heads
    scale = Dh ** -0.5
    hp = jax.lax.Precision.HIGHEST
    qkv = jnp.einsum("bnc,oc->bno", x, qkv_weight, precision=hp) + qkv_bias
    qkv = qkv.reshape(B, N, 3, num_heads, Dh).transpose(2, 0, 3, 1, 4)
    q, k, v = qkv[0], qkv[1], qkv[2]                     # each (B, H, N, Dh)
    attn = jnp.einsum("bhnd,bhmd->bhnm", q, k, precision=hp) * scale
    attn = jax.nn.softmax(attn, axis=-1)
    ctx = jnp.einsum("bhnm,bhmd->bhnd", attn, v, precision=hp)
    ctx = ctx.transpose(0, 2, 1, 3).reshape(B, N, C)
    out = jnp.einsum("bnc,oc->bno", ctx, proj_weight, precision=hp) + proj_bias
    if return_attention:
        return out, attn
    return out


if __name__ == "__main__":
    B, N, C, H = 2, 8, 32, 4          # batch=2, seq=8, dim=32, heads=4 (head_dim=8)
    key = jax.random.PRNGKey(0)
    kx, kwq, kwp, kbp = jax.random.split(key, 4)

    x = jax.random.normal(kx, (B, N, C), dtype=jnp.float32)

    # Deterministic nn.Linear-style parameters (PyTorch convention: weight is (out, in)).
    bound = 1.0 / (C ** 0.5)
    wqkv = jax.random.uniform(kwq, (3 * C, C), minval=-bound, maxval=bound,
                              dtype=jnp.float32)
    bqkv = jnp.zeros((3 * C,), dtype=jnp.float32)        # qkv_bias=False (module default)
    wproj = jax.random.uniform(kwp, (C, C), minval=-bound, maxval=bound,
                               dtype=jnp.float32)
    bproj = jax.random.uniform(kbp, (C,), minval=-bound, maxval=bound,
                               dtype=jnp.float32)

    ref_out, ref_attn = attention_ref(x, wqkv, bqkv, wproj, bproj,
                                      num_heads=H, return_attention=True)

    # 1) default path (f32 matmuls, f32 accumulation)
    out = attention_forward(x, wqkv, bqkv, wproj, bproj, num_heads=H)
    out = jax.block_until_ready(out)
    assert out.shape == (B, N, C)
    assert jnp.allclose(out, ref_out, atol=3e-2, rtol=3e-2)

    # 2) return_attention path
    out2, attn = attention_forward(x, wqkv, bqkv, wproj, bproj, num_heads=H,
                                   return_attention=True)
    out2, attn = jax.block_until_ready((out2, attn))
    assert attn.shape == (B, H, N, N)
    assert jnp.allclose(out2, ref_out, atol=3e-2, rtol=3e-2)
    assert jnp.allclose(attn.astype(jnp.float32), ref_attn, atol=3e-2, rtol=3e-2)

    # 3) bf16 matmul inputs / f32 accumulation (v6e/v7x MXU peak), 2 batch rows per step
    out_bf16 = attention_forward(x, wqkv, bqkv, wproj, bproj, num_heads=H,
                                 matmul_dtype=jnp.bfloat16, batch_block=2)
    out_bf16 = jax.block_until_ready(out_bf16)
    assert jnp.allclose(out_bf16, ref_out, atol=1e-1, rtol=1e-1)

    print("KERNEL_OK")
</pallas_src>

<mosaic_0001>
module attributes {stable_mosaic.version = 11 : i64} {
  func.func @_attention_kernel(%arg0: i32, %arg1: memref<1x8x32xf32, #tpu.memory_space<vmem>>, %arg2: memref<32x96xf32, #tpu.memory_space<vmem>>, %arg3: memref<1x96xf32, #tpu.memory_space<vmem>>, %arg4: memref<32x32xf32, #tpu.memory_space<vmem>>, %arg5: memref<1x32xf32, #tpu.memory_space<vmem>>, %arg6: memref<1x8x32xf32, #tpu.memory_space<vmem>>, %arg7: memref<8x32xf32, #tpu.memory_space<vmem>>) attributes {dimension_semantics = [#tpu.dimension_semantics<parallel>], iteration_bounds = array<i64: 2>, scalar_prefetch = 0 : i64, scratch_operands = 1 : i64, tpu.core_type = #tpu.core_type<tc>, window_params = [{transform_indices = @transform_0, window_bounds = array<i64: 1, 8, 32>}, {pipeline_mode = #tpu.pipeline_mode<synchronous>, transform_indices = @transform_1, window_bounds = array<i64: 32, 96>}, {pipeline_mode = #tpu.pipeline_mode<synchronous>, transform_indices = @transform_2, window_bounds = array<i64: 1, 96>}, {pipeline_mode = #tpu.pipeline_mode<synchronous>, transform_indices = @transform_3, window_bounds = array<i64: 32, 32>}, {pipeline_mode = #tpu.pipeline_mode<synchronous>, transform_indices = @transform_4, window_bounds = array<i64: 1, 32>}, {transform_indices = @transform_5, window_bounds = array<i64: 1, 8, 32>}]} {
    %c0 = arith.constant 0 : index
    %c0_0 = arith.constant 0 : index
    %0 = vector.load %arg2[%c0, %c0_0] : memref<32x96xf32, #tpu.memory_space<vmem>>, vector<32x96xf32>
    %c0_1 = arith.constant 0 : index
    %c0_2 = arith.constant 0 : index
    %1 = vector.load %arg4[%c0_1, %c0_2] : memref<32x32xf32, #tpu.memory_space<vmem>>, vector<32x32xf32>
    %c0_3 = arith.constant 0 : index
    %c0_4 = arith.constant 0 : index
    %2 = vector.load %arg3[%c0_3, %c0_4] : memref<1x96xf32, #tpu.memory_space<vmem>>, vector<1x96xf32>
    %c0_5 = arith.constant 0 : index
    %c0_6 = arith.constant 0 : index
    %3 = vector.load %arg5[%c0_5, %c0_6] : memref<1x32xf32, #tpu.memory_space<vmem>>, vector<1x32xf32>
    %c0_7 = arith.constant 0 : index
    %c0_8 = arith.constant 0 : index
    %c0_9 = arith.constant 0 : index
    %4 = vector.load %arg1[%c0_7, %c0_8, %c0_9] : memref<1x8x32xf32, #tpu.memory_space<vmem>>, vector<1x8x32xf32>
    %5 = vector.shape_cast %4 : vector<1x8x32xf32> to vector<8x32xf32>
    %cst = arith.constant dense<0.000000e+00> : vector<8x96xf32>
    %6 = tpu.matmul %5, %0, %cst {dimension_numbers = #tpu.dot_dimension_numbers<[1], [0], [0], [1], [0, 0, 1, 1], [], []>} : vector<8x32xf32>, vector<32x96xf32>, vector<8x96xf32> -> vector<8x96xf32>
    %7 = vector.broadcast %2 : vector<1x96xf32> to vector<8x96xf32>
    %8 = arith.addf %6, %7 : vector<8x96xf32>
    %9 = vector.extract_strided_slice %8 {offsets = [0, 0], sizes = [8, 8], strides = [1, 1]} : vector<8x96xf32> to vector<8x8xf32>
    %10 = vector.extract_strided_slice %8 {offsets = [0, 32], sizes = [8, 8], strides = [1, 1]} : vector<8x96xf32> to vector<8x8xf32>
    %11 = vector.extract_strided_slice %8 {offsets = [0, 64], sizes = [8, 8], strides = [1, 1]} : vector<8x96xf32> to vector<8x8xf32>
    %cst_10 = arith.constant dense<0.000000e+00> : vector<8x8xf32>
    %12 = tpu.matmul %9, %10, %cst_10 {dimension_numbers = #tpu.dot_dimension_numbers<[1], [1], [0], [0], [0, 0, 1, 0], [], []>} : vector<8x8xf32>, vector<8x8xf32>, vector<8x8xf32> -> vector<8x8xf32>
    %cst_11 = arith.constant dense<0xFF800000> : vector<8xf32>
    %13 = vector.multi_reduction <maximumf>, %12, %cst_11 [1] : vector<8x8xf32> to vector<8xf32>
    %14 = vector.shape_cast %13 : vector<8xf32> to vector<8x1xf32>
    %15 = vector.broadcast %14 : vector<8x1xf32> to vector<8x8xf32>
    %16 = arith.subf %12, %15 : vector<8x8xf32>
    %17 = math.exp %16 : vector<8x8xf32>
    %cst_12 = arith.constant dense<0.000000e+00> : vector<8xf32>
    %18 = vector.multi_reduction <add>, %17, %cst_12 [1] : vector<8x8xf32> to vector<8xf32>
    %19 = vector.shape_cast %18 : vector<8xf32> to vector<8x1xf32>
    %20 = tpu.reciprocal %19 {approx = true} : vector<8x1xf32> -> vector<8x1xf32>
    %21 = vector.broadcast %20 : vector<8x1xf32> to vector<8x8xf32>
    %22 = arith.mulf %17, %21 : vector<8x8xf32>
    %cst_13 = arith.constant dense<0.000000e+00> : vector<8x8xf32>
    %23 = tpu.matmul %22, %11, %cst_13 {dimension_numbers = #tpu.dot_dimension_numbers<[1], [0], [0], [1], [0, 0, 1, 1], [], []>} : vector<8x8xf32>, vector<8x8xf32>, vector<8x8xf32> -> vector<8x8xf32>
    %c0_14 = arith.constant 0 : index
    %c0_15 = arith.constant 0 : index
    %24 = vector.load %arg7[%c0_14, %c0_15] : memref<8x32xf32, #tpu.memory_space<vmem>>, vector<8x8xf32>
    tpu.vector_store %arg7[%c0_14, %c0_15], %23 {strides = array<i32>} : memref<8x32xf32, #tpu.memory_space<vmem>>, vector<8x8xf32>,
    %25 = vector.extract_strided_slice %8 {offsets = [0, 8], sizes = [8, 8], strides = [1, 1]} : vector<8x96xf32> to vector<8x8xf32>
    %26 = vector.extract_strided_slice %8 {offsets = [0, 40], sizes = [8, 8], strides = [1, 1]} : vector<8x96xf32> to vector<8x8xf32>
    %27 = vector.extract_strided_slice %8 {offsets = [0, 72], sizes = [8, 8], strides = [1, 1]} : vector<8x96xf32> to vector<8x8xf32>
    %cst_16 = arith.constant dense<0.000000e+00> : vector<8x8xf32>
    %28 = tpu.matmul %25, %26, %cst_16 {dimension_numbers = #tpu.dot_dimension_numbers<[1], [1], [0], [0], [0, 0, 1, 0], [], []>} : vector<8x8xf32>, vector<8x8xf32>, vector<8x8xf32> -> vector<8x8xf32>
    %cst_17 = arith.constant dense<0xFF800000> : vector<8xf32>
    %29 = vector.multi_reduction <maximumf>, %28, %cst_17 [1] : vector<8x8xf32> to vector<8xf32>
    %30 = vector.shape_cast %29 : vector<8xf32> to vector<8x1xf32>
    %31 = vector.broadcast %30 : vector<8x1xf32> to vector<8x8xf32>
    %32 = arith.subf %28, %31 : vector<8x8xf32>
    %33 = math.exp %32 : vector<8x8xf32>
    %cst_18 = arith.constant dense<0.000000e+00> : vector<8xf32>
    %34 = vector.multi_reduction <add>, %33, %cst_18 [1] : vector<8x8xf32> to vector<8xf32>
    %35 = vector.shape_cast %34 : vector<8xf32> to vector<8x1xf32>
    %36 = tpu.reciprocal %35 {approx = true} : vector<8x1xf32> -> vector<8x1xf32>
    %37 = vector.broadcast %36 : vector<8x1xf32> to vector<8x8xf32>
    %38 = arith.mulf %33, %37 : vector<8x8xf32>
    %cst_19 = arith.constant dense<0.000000e+00> : vector<8x8xf32>
    %39 = tpu.matmul %38, %27, %cst_19 {dimension_numbers = #tpu.dot_dimension_numbers<[1], [0], [0], [1], [0, 0, 1, 1], [], []>} : vector<8x8xf32>, vector<8x8xf32>, vector<8x8xf32> -> vector<8x8xf32>
    %c0_20 = arith.constant 0 : index
    %c8 = arith.constant 8 : index
    %40 = vector.load %arg7[%c0_20, %c8] : memref<8x32xf32, #tpu.memory_space<vmem>>, vector<8x8xf32>
    tpu.vector_store %arg7[%c0_20, %c8], %39 {strides = array<i32>} : memref<8x32xf32, #tpu.memory_space<vmem>>, vector<8x8xf32>,
    %41 = vector.extract_strided_slice %8 {offsets = [0, 16], sizes = [8, 8], strides = [1, 1]} : vector<8x96xf32> to vector<8x8xf32>
    %42 = vector.extract_strided_slice %8 {offsets = [0, 48], sizes = [8, 8], strides = [1, 1]} : vector<8x96xf32> to vector<8x8xf32>
    %43 = vector.extract_strided_slice %8 {offsets = [0, 80], sizes = [8, 8], strides = [1, 1]} : vector<8x96xf32> to vector<8x8xf32>
    %cst_21 = arith.constant dense<0.000000e+00> : vector<8x8xf32>
    %44 = tpu.matmul %41, %42, %cst_21 {dimension_numbers = #tpu.dot_dimension_numbers<[1], [1], [0], [0], [0, 0, 1, 0], [], []>} : vector<8x8xf32>, vector<8x8xf32>, vector<8x8xf32> -> vector<8x8xf32>
    %cst_22 = arith.constant dense<0xFF800000> : vector<8xf32>
    %45 = vector.multi_reduction <maximumf>, %44, %cst_22 [1] : vector<8x8xf32> to vector<8xf32>
    %46 = vector.shape_cast %45 : vector<8xf32> to vector<8x1xf32>
    %47 = vector.broadcast %46 : vector<8x1xf32> to vector<8x8xf32>
    %48 = arith.subf %44, %47 : vector<8x8xf32>
    %49 = math.exp %48 : vector<8x8xf32>
    %cst_23 = arith.constant dense<0.000000e+00> : vector<8xf32>
    %50 = vector.multi_reduction <add>, %49, %cst_23 [1] : vector<8x8xf32> to vector<8xf32>
    %51 = vector.shape_cast %50 : vector<8xf32> to vector<8x1xf32>
    %52 = tpu.reciprocal %51 {approx = true} : vector<8x1xf32> -> vector<8x1xf32>
    %53 = vector.broadcast %52 : vector<8x1xf32> to vector<8x8xf32>
    %54 = arith.mulf %49, %53 : vector<8x8xf32>
    %cst_24 = arith.constant dense<0.000000e+00> : vector<8x8xf32>
    %55 = tpu.matmul %54, %43, %cst_24 {dimension_numbers = #tpu.dot_dimension_numbers<[1], [0], [0], [1], [0, 0, 1, 1], [], []>} : vector<8x8xf32>, vector<8x8xf32>, vector<8x8xf32> -> vector<8x8xf32>
    %c0_25 = arith.constant 0 : index
    %c16 = arith.constant 16 : index
    %56 = vector.load %arg7[%c0_25, %c16] : memref<8x32xf32, #tpu.memory_space<vmem>>, vector<8x8xf32>
    tpu.vector_store %arg7[%c0_25, %c16], %55 {strides = array<i32>} : memref<8x32xf32, #tpu.memory_space<vmem>>, vector<8x8xf32>,
    %57 = vector.extract_strided_slice %8 {offsets = [0, 24], sizes = [8, 8], strides = [1, 1]} : vector<8x96xf32> to vector<8x8xf32>
    %58 = vector.extract_strided_slice %8 {offsets = [0, 56], sizes = [8, 8], strides = [1, 1]} : vector<8x96xf32> to vector<8x8xf32>
    %59 = vector.extract_strided_slice %8 {offsets = [0, 88], sizes = [8, 8], strides = [1, 1]} : vector<8x96xf32> to vector<8x8xf32>
    %cst_26 = arith.constant dense<0.000000e+00> : vector<8x8xf32>
    %60 = tpu.matmul %57, %58, %cst_26 {dimension_numbers = #tpu.dot_dimension_numbers<[1], [1], [0], [0], [0, 0, 1, 0], [], []>} : vector<8x8xf32>, vector<8x8xf32>, vector<8x8xf32> -> vector<8x8xf32>
    %cst_27 = arith.constant dense<0xFF800000> : vector<8xf32>
    %61 = vector.multi_reduction <maximumf>, %60, %cst_27 [1] : vector<8x8xf32> to vector<8xf32>
    %62 = vector.shape_cast %61 : vector<8xf32> to vector<8x1xf32>
    %63 = vector.broadcast %62 : vector<8x1xf32> to vector<8x8xf32>
    %64 = arith.subf %60, %63 : vector<8x8xf32>
    %65 = math.exp %64 : vector<8x8xf32>
    %cst_28 = arith.constant dense<0.000000e+00> : vector<8xf32>
    %66 = vector.multi_reduction <add>, %65, %cst_28 [1] : vector<8x8xf32> to vector<8xf32>
    %67 = vector.shape_cast %66 : vector<8xf32> to vector<8x1xf32>
    %68 = tpu.reciprocal %67 {approx = true} : vector<8x1xf32> -> vector<8x1xf32>
    %69 = vector.broadcast %68 : vector<8x1xf32> to vector<8x8xf32>
    %70 = arith.mulf %65, %69 : vector<8x8xf32>
    %cst_29 = arith.constant dense<0.000000e+00> : vector<8x8xf32>
    %71 = tpu.matmul %70, %59, %cst_29 {dimension_numbers = #tpu.dot_dimension_numbers<[1], [0], [0], [1], [0, 0, 1, 1], [], []>} : vector<8x8xf32>, vector<8x8xf32>, vector<8x8xf32> -> vector<8x8xf32>
    %c0_30 = arith.constant 0 : index
    %c24 = arith.constant 24 : index
    %72 = vector.load %arg7[%c0_30, %c24] : memref<8x32xf32, #tpu.memory_space<vmem>>, vector<8x8xf32>
    tpu.vector_store %arg7[%c0_30, %c24], %71 {strides = array<i32>} : memref<8x32xf32, #tpu.memory_space<vmem>>, vector<8x8xf32>,
    %c0_31 = arith.constant 0 : index
    %c0_32 = arith.constant 0 : index
    %73 = vector.load %arg7[%c0_31, %c0_32] : memref<8x32xf32, #tpu.memory_space<vmem>>, vector<8x32xf32>
    %cst_33 = arith.constant dense<0.000000e+00> : vector<8x32xf32>
    %74 = tpu.matmul %73, %1, %cst_33 {dimension_numbers = #tpu.dot_dimension_numbers<[1], [0], [0], [1], [0, 0, 1, 1], [], []>} : vector<8x32xf32>, vector<32x32xf32>, vector<8x32xf32> -> vector<8x32xf32>
    %75 = vector.broadcast %3 : vector<1x32xf32> to vector<8x32xf32>
    %76 = arith.addf %74, %75 : vector<8x32xf32>
    %77 = vector.shape_cast %76 : vector<8x32xf32> to vector<1x8x32xf32>
    %c0_34 = arith.constant 0 : index
    %c0_35 = arith.constant 0 : index
    %c0_36 = arith.constant 0 : index
    %78 = vector.load %arg6[%c0_34, %c0_35, %c0_36] : memref<1x8x32xf32, #tpu.memory_space<vmem>>, vector<1x8x32xf32>
    tpu.vector_store %arg6[%c0_34, %c0_35, %c0_36], %77 {strides = array<i32>} : memref<1x8x32xf32, #tpu.memory_space<vmem>>, vector<1x8x32xf32>,
    return
  }
  func.func @transform_0(%arg0: i32) -> (i32, i32, i32) {
    %c0_i32 = arith.constant 0 : i32
    %c0_i32_0 = arith.constant 0 : i32
    %c0_i32_1 = arith.constant 0 : i32
    return %arg0, %c0_i32, %c0_i32_0 : i32, i32, i32
  }
  func.func @transform_1(%arg0: i32) -> (i32, i32) {
    %c0_i32 = arith.constant 0 : i32
    %c0_i32_0 = arith.constant 0 : i32
    %c0_i32_1 = arith.constant 0 : i32
    return %c0_i32, %c0_i32_0 : i32, i32
  }
  func.func @transform_2(%arg0: i32) -> (i32, i32) {
    %c0_i32 = arith.constant 0 : i32
    %c0_i32_0 = arith.constant 0 : i32
    %c0_i32_1 = arith.constant 0 : i32
    return %c0_i32, %c0_i32_0 : i32, i32
  }
  func.func @transform_3(%arg0: i32) -> (i32, i32) {
    %c0_i32 = arith.constant 0 : i32
    %c0_i32_0 = arith.constant 0 : i32
    %c0_i32_1 = arith.constant 0 : i32
    return %c0_i32, %c0_i32_0 : i32, i32
  }
  func.func @transform_4(%arg0: i32) -> (i32, i32) {
    %c0_i32 = arith.constant 0 : i32
    %c0_i32_0 = arith.constant 0 : i32
    %c0_i32_1 = arith.constant 0 : i32
    return %c0_i32, %c0_i32_0 : i32, i32
  }
  func.func @transform_5(%arg0: i32) -> (i32, i32, i32) {
    %c0_i32 = arith.constant 0 : i32
    %c0_i32_0 = arith.constant 0 : i32
    %c0_i32_1 = arith.constant 0 : i32
    return %arg0, %c0_i32, %c0_i32_0 : i32, i32, i32
  }
}

</mosaic_0001>

<llo_original>
// kernel: tpu_custom_call.1
$region0: #{tpu_custom_call.1}
  #allocation0 [shape = 'u32[]', space=smem, size = 0x4, offset = 0x4, fixed_abs, tag = 'smem constant byte address 0x4 - core index']
  #allocation1 [shape = 'u32[144,128]{1,0:T(1,128)}', space=vmem, size = 0x12000, scoped, tag = 'internal scratch']
  #allocation2 [shape = 'f32[8,32]{1,0:T(8,128)}', space=vmem, size = 0x1000, scoped, tag = 'scratch operand']
  %s0 = inlined_call_operand.hbm [shape: f32[2,8,32], index: 0, kind: input, shape index: {}]
  %s1 = inlined_call_operand.hbm [shape: f32[32,96], index: 1, kind: input, shape index: {}]
  %s2 = inlined_call_operand.vmem [shape: f32[1,96], index: 2, kind: input, shape index: {}]
  %s3 = inlined_call_operand.hbm [shape: f32[32,32], index: 3, kind: input, shape index: {}]
  %s4 = inlined_call_operand.vmem [shape: f32[1,32], index: 4, kind: input, shape index: {}]
  %s5 = inlined_call_operand.hbm [shape: f32[2,8,32], index: 5, kind: output, shape index: {}]
  %s6 = sld [smem:[#allocation0]]
  $region65: #{tpu_custom_call.1} parent=0
    _
  %s8 = ssub.s32 1, %s6
  %s9 = scalar_select 0, %s8, %s6
  $region1: #{tpu_custom_call.1} parent=0
    #allocation3 [shape = 'u8[8192]{0}', space=vmem, size = 0x2000, scoped, tag = 'input window, operand 0']
    #allocation4 [shape = 's32[2]{0}', space=sflag, size = 0x8, scoped, tag = 'scoped memory for tpu_custom_call.1']
    #allocation5 [shape = 's32[2]{0}', space=sflag, size = 0x8, scoped, tag = 'scoped memory for tpu_custom_call.1']
    #allocation6 [shape = 'u8[16384]{0}', space=vmem, size = 0x4000, scoped, tag = 'input window, operand 1, single buffered']
    #allocation7 [shape = 's32[1]{0}', space=sflag, size = 0x4, scoped, tag = 'scoped memory for tpu_custom_call.1']
    #allocation8 [shape = 'u8[16384]{0}', space=vmem, size = 0x4000, scoped, tag = 'input window, operand 3, single buffered']
    #allocation9 [shape = 'u8[8192]{0}', space=vmem, size = 0x2000, scoped, tag = 'output window, operand 0']
    %10 = vsyncpa [#allocation4], 0
    %s11 = scalar_lea.sflag [#allocation4], 1
    %12 = vsyncpa %s11, 0
    %13 = vsyncpa [#allocation7], 0
    %14 = vsyncpa [#allocation5], 0
    %s15 = scalar_lea.sflag [#allocation5], 1
    %16 = vsyncpa %s15, 0
    loop: start=0, step=1, limit=4
    $region2: #{tpu_custom_call.1} parent=1 // loop_pre_header
      _
    $region3: #{tpu_custom_call.1} parent=1 // loop_header
      %s18 = sphi 0, %s22
      %p19 = scmp.ge.s32.totalorder %s18, 4
      %s28 = sphi 0, %s30
      %s31 = sphi 0, %s28
      %s32 = sphi 0, %s31
      %s48 = sphi 0, %s32
      %s52 = sphi 0, %s52
      %s54 = sphi 0, %s52
      %s55 = sphi 0, %s54
      %s69 = sphi 0, %s55
      %s73 = sphi 0, %s73
      %s75 = sphi 0, %s73
      %s76 = sphi 0, %s75
      %s90 = sphi 0, %s76
      %s94 = sphi 0, %s94
      %s96 = sphi 0, %s94
      %s97 = sphi 0, %s96
      %s111 = sphi 0, %s97
      %s115 = sphi 0, %s115
      %s117 = sphi 0, %s115
      %s118 = sphi 0, %s117
      %s132 = sphi 0, %s118
      %s138 = sphi 0, %s140
      %s141 = sphi 0, %s138
      %s142 = sphi 0, %s141
      %s158 = sphi 0, %s142
    $region4: #{tpu_custom_call.1} parent=1 // loop_header_branch
      %21 = sbr.rel (%p19) target = $region8
    $region5: #{tpu_custom_call.1} parent=1 // loop_body
      %s23 = ssub.s32 %s18, 1
      %s24 = ssub.s32 %s18, 2
      %s25 = sadd.s32 %s18, 1
      %s26 = ssub.s32 %s18, %s25
      %p27 = scmp.eq.s32.totalorder %s26, 0
      %s29 = sadd.s32 %s28, 1
      %s30 = scalar_select %p27, %s28, %s29
      %p33 = pneg %p27
      %p34 = scmp.eq.s32.totalorder %s18, 1
      %p35 = por %p33, %p34
      %p36 = scmp.ne.s32.totalorder %s28, %s31
      %p37 = scmp.eq.s32.totalorder %s18, 0
      %p38 = por %p36, %p37
      %p39 = scmp.ne.s32.totalorder %s28, %s31
      %p40 = scmp.eq.s32.totalorder %s23, 1
      %p41 = por %p39, %p40
      %p42 = scmp.ne.s32.totalorder %s31, %s32
      %p43 = scmp.eq.s32.totalorder %s23, 0
      %p44 = por %p42, %p43
      %p45 = scmp.ne.s32.totalorder %s31, %s32
      %p46 = scmp.eq.s32.totalorder %s24, 1
      %p47 = por %p45, %p46
      %p49 = scmp.ne.s32.totalorder %s32, %s48
      %p50 = scmp.eq.s32.totalorder %s24, 0
      %p51 = por %p49, %p50
      %s53 = sadd.s32 %s52, 1
      %p56 = scmp.eq.s32.totalorder %s18, 1
      %p57 = scmp.ne.s32.totalorder %s52, %s54
      %p58 = scmp.eq.s32.totalorder %s18, 0
      %p59 = por %p57, %p58
      %p60 = scmp.ne.s32.totalorder %s52, %s54
      %p61 = scmp.eq.s32.totalorder %s23, 1
      %p62 = por %p60, %p61
      %p63 = scmp.ne.s32.totalorder %s54, %s55
      %p64 = scmp.eq.s32.totalorder %s23, 0
      %p65 = por %p63, %p64
      %p66 = scmp.ne.s32.totalorder %s54, %s55
      %p67 = scmp.eq.s32.totalorder %s24, 1
      %p68 = por %p66, %p67
      %p70 = scmp.ne.s32.totalorder %s55, %s69
      %p71 = scmp.eq.s32.totalorder %s24, 0
      %p72 = por %p70, %p71
      %s74 = sadd.s32 %s73, 1
      %p77 = scmp.eq.s32.totalorder %s18, 1
      %p78 = scmp.ne.s32.totalorder %s73, %s75
      %p79 = scmp.eq.s32.totalorder %s18, 0
      %p80 = por %p78, %p79
      %p81 = scmp.ne.s32.totalorder %s73, %s75
      %p82 = scmp.eq.s32.totalorder %s23, 1
      %p83 = por %p81, %p82
      %p84 = scmp.ne.s32.totalorder %s75, %s76
      %p85 = scmp.eq.s32.totalorder %s23, 0
      %p86 = por %p84, %p85
      %p87 = scmp.ne.s32.totalorder %s75, %s76
      %p88 = scmp.eq.s32.totalorder %s24, 1
      %p89 = por %p87, %p88
      %p91 = scmp.ne.s32.totalorder %s76, %s90
      %p92 = scmp.eq.s32.totalorder %s24, 0
      %p93 = por %p91, %p92
      %s95 = sadd.s32 %s94, 1
      %p98 = scmp.eq.s32.totalorder %s18, 1
      %p99 = scmp.ne.s32.totalorder %s94, %s96
      %p100 = scmp.eq.s32.totalorder %s18, 0
      %p101 = por %p99, %p100
      %p102 = scmp.ne.s32.totalorder %s94, %s96
      %p103 = scmp.eq.s32.totalorder %s23, 1
      %p104 = por %p102, %p103
      %p105 = scmp.ne.s32.totalorder %s96, %s97
      %p106 = scmp.eq.s32.totalorder %s23, 0
      %p107 = por %p105, %p106
      %p108 = scmp.ne.s32.totalorder %s96, %s97
      %p109 = scmp.eq.s32.totalorder %s24, 1
      %p110 = por %p108, %p109
      %p112 = scmp.ne.s32.totalorder %s97, %s111
      %p113 = scmp.eq.s32.totalorder %s24, 0
      %p114 = por %p112, %p113
      %s116 = sadd.s32 %s115, 1
      %p119 = scmp.eq.s32.totalorder %s18, 1
      %p120 = scmp.ne.s32.totalorder %s115, %s117
      %p121 = scmp.eq.s32.totalorder %s18, 0
      %p122 = por %p120, %p121
      %p123 = scmp.ne.s32.totalorder %s115, %s117
      %p124 = scmp.eq.s32.totalorder %s23, 1
      %p125 = por %p123, %p124
      %p126 = scmp.ne.s32.totalorder %s117, %s118
      %p127 = scmp.eq.s32.totalorder %s23, 0
      %p128 = por %p126, %p127
      %p129 = scmp.ne.s32.totalorder %s117, %s118
      %p130 = scmp.eq.s32.totalorder %s24, 1
      %p131 = por %p129, %p130
      %p133 = scmp.ne.s32.totalorder %s118, %s132
      %p134 = scmp.eq.s32.totalorder %s24, 0
      %p135 = por %p133, %p134
      %s136 = ssub.s32 %s18, %s25
      %p137 = scmp.eq.s32.totalorder %s136, 0
      %s139 = sadd.s32 %s138, 1
      %s140 = scalar_select %p137, %s138, %s139
      %p143 = pneg %p137
      %p144 = scmp.eq.s32.totalorder %s18, 1
      %p145 = por %p143, %p144
      %p146 = scmp.ne.s32.totalorder %s138, %s141
      %p147 = scmp.eq.s32.totalorder %s18, 0
      %p148 = por %p146, %p147
      %p149 = scmp.ne.s32.totalorder %s138, %s141
      %p150 = scmp.eq.s32.totalorder %s23, 1
      %p151 = por %p149, %p150
      %p152 = scmp.ne.s32.totalorder %s141, %s142
      %p153 = scmp.eq.s32.totalorder %s23, 0
      %p154 = por %p152, %p153
      %p155 = scmp.ne.s32.totalorder %s141, %s142
      %p156 = scmp.eq.s32.totalorder %s24, 1
      %p157 = por %p155, %p156
      %p159 = scmp.ne.s32.totalorder %s142, %s158
      %p160 = scmp.eq.s32.totalorder %s24, 0
      %p161 = por %p159, %p160
      %p162 = scmp.le.s32.totalorder 1, %s18
      %p163 = scmp.lt.s32.totalorder %s18, 3
      %p164 = pnand %p162, %p163
      %p165 = pneg %p164
      // Predicated region
      $region9: #{tpu_custom_call.1} parent=5 // pred_check
        _
      $region10: #{tpu_custom_call.1} parent=5 // pred_check_branch
        %167 = sbr.rel (%p164) target = $region12
      $region11: #{tpu_custom_call.1} parent=5 // pred_region
        %s168 = ssub.s32 %s18, 1
        // Predicated region
        $region13: #{tpu_custom_call.1} parent=11 // pred_check
          %p169 = pneg %p65
        $region14: #{tpu_custom_call.1} parent=11 // pred_check_branch
          %171 = sbr.rel (%p169) target = $region16
        $region15: #{tpu_custom_call.1} parent=11 // pred_region
          %s173 = ssub.s32 512, 512
          %174 = vsyncadd [#allocation7], %s173
          %s175 = sshll.u32 [#allocation6], 4
          %s176 = int_to_ptr.vmem [resolvable:$true] %s175
          %181 = dma.hbm_to_vmem [thread:$0]  %s1, 512, %s176, [#allocation7], 128, 128, 8
        $region16: #{tpu_custom_call.1} parent=11 // pred_fallthru
          _
        // Predicated region
        $region17: #{tpu_custom_call.1} parent=11 // pred_check
          %p182 = pneg %p86
        $region18: #{tpu_custom_call.1} parent=11 // pred_check_branch
          %184 = sbr.rel (%p182) target = $region20
        $region19: #{tpu_custom_call.1} parent=11 // pred_region
          _
        $region20: #{tpu_custom_call.1} parent=11 // pred_fallthru
          _
        // Predicated region
        $region21: #{tpu_custom_call.1} parent=11 // pred_check
          %p185 = pneg %p107
        $region22: #{tpu_custom_call.1} parent=11 // pred_check_branch
          %187 = sbr.rel (%p185) target = $region24
        $region23: #{tpu_custom_call.1} parent=11 // pred_region
          %s189 = ssub.s32 512, 512
          %190 = vsyncadd [#allocation7], %s189
          %s191 = sshll.u32 [#allocation8], 4
          %s192 = int_to_ptr.vmem [resolvable:$true] %s191
          %197 = dma.hbm_to_vmem [thread:$0]  %s3, 512, %s192, [#allocation7], 128, 128, 8
        $region24: #{tpu_custom_call.1} parent=11 // pred_fallthru
          _
        // Predicated region
        $region25: #{tpu_custom_call.1} parent=11 // pred_check
          %p198 = pneg %p128
        $region26: #{tpu_custom_call.1} parent=11 // pred_check_branch
          %200 = sbr.rel (%p198) target = $region28
        $region27: #{tpu_custom_call.1} parent=11 // pred_region
          _
        $region28: #{tpu_custom_call.1} parent=11 // pred_fallthru
          _
      $region12: #{tpu_custom_call.1} parent=5 // pred_fallthru
        _
      %p201 = scmp.lt.s32.totalorder %s18, 2
      // Predicated region
      $region29: #{tpu_custom_call.1} parent=5 // pred_check
        %p202 = pneg %p201
      $region30: #{tpu_custom_call.1} parent=5 // pred_check_branch
        %204 = sbr.rel (%p202) target = $region32
      $region31: #{tpu_custom_call.1} parent=5 // pred_region
        // Predicated region
        $region33: #{tpu_custom_call.1} parent=31 // pred_check
          %p205 = pneg %p38
        $region34: #{tpu_custom_call.1} parent=31 // pred_check_branch
          %207 = sbr.rel (%p205) target = $region36
        $region35: #{tpu_custom_call.1} parent=31 // pred_region
          %s208 = sand.u32 %s28, 1
          %s209 = scalar_lea.sflag [#allocation4], %s208
          %s210 = sand.u32 %s28, 1
          %s211 = smul.addr %s210, 8
          %s212 = scalar_lea.vmem [#allocation3], %s211
          %s214 = ssub.s32 128, 128
          %215 = vsyncadd %s209, %s214
          %s216 = smul.addr %s18, 128
          %s217 = scalar_lea.hbm %s0, %s216
          %s219 = sshll.u32 %s212, 4
          %s220 = int_to_ptr.vmem [resolvable:$true] %s219
          %222 = dma.hbm_to_vmem [thread:$0]  %s217, 128, %s220, %s209
        $region36: #{tpu_custom_call.1} parent=31 // pred_fallthru
          _
      $region32: #{tpu_custom_call.1} parent=5 // pred_fallthru
        _
      %p223 = scmp.le.s32.totalorder 1, %s18
      %p224 = scmp.lt.s32.totalorder %s18, 3
      %p225 = pnand %p223, %p224
      %p226 = pneg %p225
      // Predicated region
      $region37: #{tpu_custom_call.1} parent=5 // pred_check
        _
      $region38: #{tpu_custom_call.1} parent=5 // pred_check_branch
        %228 = sbr.rel (%p225) target = $region40
      $region39: #{tpu_custom_call.1} parent=5 // pred_region
        %s229 = ssub.s32 %s18, 1
        %s230 = sand.u32 %s31, 1
        %s231 = scalar_lea.sflag [#allocation4], %s230
        %s232 = sand.u32 %s31, 1
        %s233 = smul.addr %s232, 8
        %s234 = scalar_lea.vmem [#allocation3], %s233
        // Predicated region
        $region41: #{tpu_custom_call.1} parent=39 // pred_check
          %p235 = pneg %p44
        $region42: #{tpu_custom_call.1} parent=39 // pred_check_branch
          %237 = sbr.rel (%p235) target = $region44
        $region43: #{tpu_custom_call.1} parent=39 // pred_region
          %238 = dma.done %s231, 128
        $region44: #{tpu_custom_call.1} parent=39 // pred_fallthru
          _
        // Predicated region
        $region45: #{tpu_custom_call.1} parent=39 // pred_check
          %p239 = pneg %p65
        $region46: #{tpu_custom_call.1} parent=39 // pred_check_branch
          %241 = sbr.rel (%p239) target = $region48
        $region47: #{tpu_custom_call.1} parent=39 // pred_region
          %242 = dma.done [#allocation7], 512
        $region48: #{tpu_custom_call.1} parent=39 // pred_fallthru
          _
        // Predicated region
        $region49: #{tpu_custom_call.1} parent=39 // pred_check
          %p243 = pneg %p107
        $region50: #{tpu_custom_call.1} parent=39 // pred_check_branch
          %245 = sbr.rel (%p243) target = $region52
        $region51: #{tpu_custom_call.1} parent=39 // pred_region
          %246 = dma.done [#allocation7], 512
        $region52: #{tpu_custom_call.1} parent=39 // pred_fallthru
          _
        %s247 = sand.u32 %s31, 1
        %s248 = scalar_lea.sflag [#allocation4], %s247
        %s249 = sand.u32 %s31, 1
        %s250 = smul.addr %s249, 8
        %s251 = scalar_lea.vmem [#allocation3], %s250
        %p252 = pneg %p44
        %p253 = pneg %p41
        %p254 = pneg %p65
        %p255 = pneg %p62
        %p256 = pneg %p86
        %p257 = pneg %p83
        %p258 = pneg %p107
        %p259 = pneg %p104
        %p260 = pneg %p128
        %p261 = pneg %p125
        %p262 = pneg %p154
        %p263 = pneg %p151
        %s264 = sand.u32 %s141, 1
        %s265 = scalar_lea.sflag [#allocation5], %s264
        %s266 = sand.u32 %s141, 1
        %s267 = smul.addr %s266, 8
        %s268 = scalar_lea.vmem [#allocation9], %s267
        %v269 = vld [vmem:[#allocation6] sm:$0xff]
        %v270 = vld [vmem:[#allocation6 + $0x8] sm:$0xff]
        %v271 = vld [vmem:[#allocation6 + $0x10] sm:$0xff]
        %v272 = vld [vmem:[#allocation6 + $0x18] sm:$0xff]
        %v273 = vld [vmem:[#allocation8] sm:$0xff]
        %v274 = vld [vmem:[#allocation8 + $0x8] sm:$0xff]
        %v275 = vld [vmem:[#allocation8 + $0x10] sm:$0xff]
        %v276 = vld [vmem:[#allocation8 + $0x18] sm:$0xff]
        %v277 = vld [vmem:[%s2] sm:$0x1]
        %v278 = vld [vmem:[%s4] sm:$0x1]
        %v279 = vld [vmem:[%s234] sm:$0xff]
        %v281 = vlaneseq
        %v282 = vshrl.u32 %v281, 7
        %v283 = vsub.s32 0, %v282
        %v284 = vrot.slane %v277, %v283
        %vm286 = vcmask 261120
        %v288 = vsel %vm286, %v279, 0
        %290 = vmatprep.subr.mxu0 0.0
        %291 = vmatpush1.msra.mxu0 %v269
        %292 = vmatprep.subr.mxu0 0.0
        %293 = vmatpush1.msra.mxu0 %v270
        %294 = vmatprep.subr.mxu0 0.0
        %295 = vmatpush1.msra.mxu0 %v271
        %296 = vmatprep.subr.mxu0 0.0
        %297 = vmatpush1.msra.mxu0 %v272
        %298 = vmatprep.subr.mxu0 0.0
        %299 = vmatpush1.msra.mxu0 0.0
        %300 = vmatprep.subr.mxu0 0.0
        %301 = vmatpush1.msra.mxu0 0.0
        %302 = vmatprep.subr.mxu0 0.0
        %303 = vmatpush1.msra.mxu0 0.0
        %304 = vmatprep.subr.mxu0 0.0
        %305 = vmatpush1.msra.mxu0 0.0
        %306 = vmatprep.subr.mxu0 0.0
        %307 = vmatpush1.msra.mxu0 0.0
        %308 = vmatprep.subr.mxu0 0.0
        %309 = vmatpush1.msra.mxu0 0.0
        %310 = vmatprep.subr.mxu0 0.0
        %311 = vmatpush1.msra.mxu0 0.0
        %312 = vmatprep.subr.mxu0 0.0
        %313 = vmatpush1.msra.mxu0 0.0
        %314 = vmatprep.subr.mxu0 0.0
        %315 = vmatpush1.msra.mxu0 0.0
        %316 = vmatprep.subr.mxu0 0.0
        %317 = vmatpush1.msra.mxu0 0.0
        %318 = vmatprep.subr.mxu0 0.0
        %319 = vmatpush1.msra.mxu0 0.0
        %320 = vmatprep.subr.mxu0 0.0
        %321 = vmatpush1.msra.mxu0 0.0
        %322 = vmatprep.subr.mxu0 0.0
        %323 = vmatpush1.msra.mxu0 0.0
        %324 = vmatprep.subr.mxu0 0.0
        %325 = vmatpush1.msra.mxu0 0.0
        %326 = vmatprep.subr.mxu0 0.0
        %327 = vmatpush1.msra.mxu0 0.0
        %328 = vmatprep.subr.mxu0 0.0
        %329 = vmatpush1.msra.mxu0 0.0
        %330 = vmatprep.subr.mxu0 0.0
        %331 = vmatpush1.msra.mxu0 0.0
        %332 = vmatprep.subr.mxu0 0.0
        %333 = vmatpush1.msra.mxu0 0.0
        %334 = vmatprep.subr.mxu0 0.0
        %335 = vmatpush1.msra.mxu0 0.0
        %336 = vmatprep.subr.mxu0 0.0
        %337 = vmatpush1.msra.mxu0 0.0
        %338 = vmatprep.subr.mxu0 0.0
        %339 = vmatpush1.msra.mxu0 0.0
        %340 = vmatprep.subr.mxu0 0.0
        %341 = vmatpush1.msra.mxu0 0.0
        %342 = vmatprep.subr.mxu0 0.0
        %343 = vmatpush1.msra.mxu0 0.0
        %344 = vmatprep.subr.mxu0 0.0
        %345 = vmatpush1.msra.mxu0 0.0
        %346 = vmatprep.subr.mxu0 0.0
        %347 = vmatpush1.msra.mxu0 0.0
        %348 = vmatprep.subr.mxu0 0.0
        %349 = vmatpush1.msra.mxu0 0.0
        %350 = vmatprep.subr.mxu0 0.0
        %351 = vmatpush1.msra.mxu0 0.0
        %352 = vmatprep.subr.mxu0 0.0
        %353 = vmatpush1.msra.mxu0 0.0
        %354 = vmatprep.mubr.f32.mxu0 0.0
        %355 = vmatmul.mubr.f32.gmra.mrb[0].mxu0 %v288
        %v356 = vpop.f32.mrb[0].mxu0
        %v357 = vadd.f32 %v284, %v356
        %v358 = vpop.f32.mrb[0].mxu0
        %359 = vdwg.mxu0
        %361 = vrot.lane.b32.xlu0 %v357, 96
        %v362 = vpop.permute.xlu0 %361
        %vm363 = vcmask 64512
        %v364 = vsel %vm363, %v357, 0
        %v366 = vsel %vm363, %v362, 0
        %368 = vmatprep.subr.mxu0 0.0
        %369 = vmatpush1.xpose.msra.mxu0 %v366
        %370 = vmatprep.subr.mxu0 0.0
        %371 = vmatpush1.xpose.msra.mxu0 0.0
        %372 = vmatprep.subr.mxu0 0.0
        %373 = vmatpush1.xpose.msra.mxu0 0.0
        %374 = vmatprep.subr.mxu0 0.0
        %375 = vmatpush1.xpose.msra.mxu0 0.0
        %376 = vmatprep.subr.mxu0 0.0
        %377 = vmatpush1.xpose.msra.mxu0 0.0
        %378 = vmatprep.subr.mxu0 0.0
        %379 = vmatpush1.xpose.msra.mxu0 0.0
        %380 = vmatprep.subr.mxu0 0.0
        %381 = vmatpush1.xpose.msra.mxu0 0.0
        %382 = vmatprep.subr.mxu0 0.0
        %383 = vmatpush1.xpose.msra.mxu0 0.0
        %384 = vmatprep.subr.mxu0 0.0
        %385 = vmatpush1.xpose.msra.mxu0 0.0
        %386 = vmatprep.subr.mxu0 0.0
        %387 = vmatpush1.xpose.msra.mxu0 0.0
        %388 = vmatprep.subr.mxu0 0.0
        %389 = vmatpush1.xpose.msra.mxu0 0.0
        %390 = vmatprep.subr.mxu0 0.0
        %391 = vmatpush1.xpose.msra.mxu0 0.0
        %392 = vmatprep.subr.mxu0 0.0
        %393 = vmatpush1.xpose.msra.mxu0 0.0
        %394 = vmatprep.subr.mxu0 0.0
        %395 = vmatpush1.xpose.msra.mxu0 0.0
        %396 = vmatprep.subr.mxu0 0.0
        %397 = vmatpush1.xpose.msra.mxu0 0.0
        %398 = vmatprep.subr.mxu0 0.0
        %399 = vmatpush1.xpose.msra.mxu0 0.0
        %400 = vmatprep.subr.mxu0 0.0
        %401 = vmatpush1.xpose.msra.mxu0 0.0
        %402 = vmatprep.subr.mxu0 0.0
        %403 = vmatpush1.xpose.msra.mxu0 0.0
        %404 = vmatprep.subr.mxu0 0.0
        %405 = vmatpush1.xpose.msra.mxu0 0.0
        %406 = vmatprep.subr.mxu0 0.0
        %407 = vmatpush1.xpose.msra.mxu0 0.0
        %408 = vmatprep.subr.mxu0 0.0
        %409 = vmatpush1.xpose.msra.mxu0 0.0
        %410 = vmatprep.subr.mxu0 0.0
        %411 = vmatpush1.xpose.msra.mxu0 0.0
        %412 = vmatprep.subr.mxu0 0.0
        %413 = vmatpush1.xpose.msra.mxu0 0.0
        %414 = vmatprep.subr.mxu0 0.0
        %415 = vmatpush1.xpose.msra.mxu0 0.0
        %416 = vmatprep.subr.mxu0 0.0
        %417 = vmatpush1.xpose.msra.mxu0 0.0
        %418 = vmatprep.subr.mxu0 0.0
        %419 = vmatpush1.xpose.msra.mxu0 0.0
        %420 = vmatprep.subr.mxu0 0.0
        %421 = vmatpush1.xpose.msra.mxu0 0.0
        %422 = vmatprep.subr.mxu0 0.0
        %423 = vmatpush1.xpose.msra.mxu0 0.0
        %424 = vmatprep.subr.mxu0 0.0
        %425 = vmatpush1.xpose.msra.mxu0 0.0
        %426 = vmatprep.subr.mxu0 0.0
        %427 = vmatpush1.xpose.msra.mxu0 0.0
        %428 = vmatprep.subr.mxu0 0.0
        %429 = vmatpush1.xpose.msra.mxu0 0.0
        %430 = vmatprep.subr.mxu0 0.0
        %431 = vmatpush1.xpose.msra.mxu0 0.0
        %432 = vmatprep.mubr.f32.mxu0 0.0
        %433 = vmatmul.mubr.f32.gmra.mrb[0].mxu0 %v364
        %v434 = vpop.f32.mrb[0].mxu0
        %v435 = vadd.f32 0.0, %v434
        %v436 = vpop.f32.mrb[0].mxu0
        %437 = vdwg.mxu0
        %v438 = vsel %vm363, %v435, -inf
        %439 = vmax.xlane.f32.xlu0 %v438
        %v440 = vpop.xlane.xlu0 %439
        %v441 = vsub.f32 %v435, %v440
        %v442 = vmul.f32 %v441, 1.442695
        %v443 = vpow.pop %v442
        %v444 = vsel %vm363, %v443, 0.0
        %445 = vadd.xlane.f32.xlu0 %v444
        %v446 = vpop.xlane.xlu0 %445
        %v447 = vrcp.pop %v446
        %v448 = vmul.f32 %v443, %v447
        %449 = vrot.lane.b32.xlu0 %v357, 64
        %v450 = vpop.permute.xlu0 %449
        %v453 = vsel %vm363, %v448, 0
        %455 = vmatprep.subr.mxu0 0.0
        %456 = vmatpush1.msra.mxu0 %v450
        %457 = vmatprep.subr.mxu0 0.0
        %458 = vmatpush1.msra.mxu0 0.0
        %459 = vmatprep.subr.mxu0 0.0
        %460 = vmatpush1.msra.mxu0 0.0
        %461 = vmatprep.subr.mxu0 0.0
        %462 = vmatpush1.msra.mxu0 0.0
        %463 = vmatprep.subr.mxu0 0.0
        %464 = vmatpush1.msra.mxu0 0.0
        %465 = vmatprep.subr.mxu0 0.0
        %466 = vmatpush1.msra.mxu0 0.0
        %467 = vmatprep.subr.mxu0 0.0
        %468 = vmatpush1.msra.mxu0 0.0
        %469 = vmatprep.subr.mxu0 0.0
        %470 = vmatpush1.msra.mxu0 0.0
        %471 = vmatprep.subr.mxu0 0.0
        %472 = vmatpush1.msra.mxu0 0.0
        %473 = vmatprep.subr.mxu0 0.0
        %474 = vmatpush1.msra.mxu0 0.0
        %475 = vmatprep.subr.mxu0 0.0
        %476 = vmatpush1.msra.mxu0 0.0
        %477 = vmatprep.subr.mxu0 0.0
        %478 = vmatpush1.msra.mxu0 0.0
        %479 = vmatprep.subr.mxu0 0.0
        %480 = vmatpush1.msra.mxu0 0.0
        %481 = vmatprep.subr.mxu0 0.0
        %482 = vmatpush1.msra.mxu0 0.0
        %483 = vmatprep.subr.mxu0 0.0
        %484 = vmatpush1.msra.mxu0 0.0
        %485 = vmatprep.subr.mxu0 0.0
        %486 = vmatpush1.msra.mxu0 0.0
        %487 = vmatprep.subr.mxu0 0.0
        %488 = vmatpush1.msra.mxu0 0.0
        %489 = vmatprep.subr.mxu0 0.0
        %490 = vmatpush1.msra.mxu0 0.0
        %491 = vmatprep.subr.mxu0 0.0
        %492 = vmatpush1.msra.mxu0 0.0
        %493 = vmatprep.subr.mxu0 0.0
        %494 = vmatpush1.msra.mxu0 0.0
        %495 = vmatprep.subr.mxu0 0.0
        %496 = vmatpush1.msra.mxu0 0.0
        %497 = vmatprep.subr.mxu0 0.0
        %498 = vmatpush1.msra.mxu0 0.0
        %499 = vmatprep.subr.mxu0 0.0
        %500 = vmatpush1.msra.mxu0 0.0
        %501 = vmatprep.subr.mxu0 0.0
        %502 = vmatpush1.msra.mxu0 0.0
        %503 = vmatprep.subr.mxu0 0.0
        %504 = vmatpush1.msra.mxu0 0.0
        %505 = vmatprep.subr.mxu0 0.0
        %506 = vmatpush1.msra.mxu0 0.0
        %507 = vmatprep.subr.mxu0 0.0
        %508 = vmatpush1.msra.mxu0 0.0
        %509 = vmatprep.subr.mxu0 0.0
        %510 = vmatpush1.msra.mxu0 0.0
        %511 = vmatprep.subr.mxu0 0.0
        %512 = vmatpush1.msra.mxu0 0.0
        %513 = vmatprep.subr.mxu0 0.0
        %514 = vmatpush1.msra.mxu0 0.0
        %515 = vmatprep.subr.mxu0 0.0
        %516 = vmatpush1.msra.mxu0 0.0
        %517 = vmatprep.subr.mxu0 0.0
        %518 = vmatpush1.msra.mxu0 0.0
        %519 = vmatprep.mubr.f32.mxu0 0.0
        %520 = vmatmul.mubr.f32.gmra.mrb[0].mxu0 %v453
        %v521 = vpop.f32.mrb[0].mxu0
        %v522 = vadd.f32 0.0, %v521
        %v523 = vpop.f32.mrb[0].mxu0
        %524 = vdwg.mxu0
        %525 = vst.msk [vmem:[#allocation2] sm:$0xff] %vm363, %v522
        %526 = vrot.lane.b32.xlu0 %v357, 120
        %v527 = vpop.permute.xlu0 %526
        %528 = vrot.lane.b32.xlu0 %v357, 88
        %v529 = vpop.permute.xlu0 %528
        %v530 = vsel %vm363, %v527, 0
        %v532 = vsel %vm363, %v529, 0
        %534 = vmatprep.subr.mxu0 0.0
        %535 = vmatpush1.xpose.msra.mxu0 %v532
        %536 = vmatprep.subr.mxu0 0.0
        %537 = vmatpush1.xpose.msra.mxu0 0.0
        %538 = vmatprep.subr.mxu0 0.0
        %539 = vmatpush1.xpose.msra.mxu0 0.0
        %540 = vmatprep.subr.mxu0 0.0
        %541 = vmatpush1.xpose.msra.mxu0 0.0
        %542 = vmatprep.subr.mxu0 0.0
        %543 = vmatpush1.xpose.msra.mxu0 0.0
        %544 = vmatprep.subr.mxu0 0.0
        %545 = vmatpush1.xpose.msra.mxu0 0.0
        %546 = vmatprep.subr.mxu0 0.0
        %547 = vmatpush1.xpose.msra.mxu0 0.0
        %548 = vmatprep.subr.mxu0 0.0
        %549 = vmatpush1.xpose.msra.mxu0 0.0
        %550 = vmatprep.subr.mxu0 0.0
        %551 = vmatpush1.xpose.msra.mxu0 0.0
        %552 = vmatprep.subr.mxu0 0.0
        %553 = vmatpush1.xpose.msra.mxu0 0.0
        %554 = vmatprep.subr.mxu0 0.0
        %555 = vmatpush1.xpose.msra.mxu0 0.0
        %556 = vmatprep.subr.mxu0 0.0
        %557 = vmatpush1.xpose.msra.mxu0 0.0
        %558 = vmatprep.subr.mxu0 0.0
        %559 = vmatpush1.xpose.msra.mxu0 0.0
        %560 = vmatprep.subr.mxu0 0.0
        %561 = vmatpush1.xpose.msra.mxu0 0.0
        %562 = vmatprep.subr.mxu0 0.0
        %563 = vmatpush1.xpose.msra.mxu0 0.0
        %564 = vmatprep.subr.mxu0 0.0
        %565 = vmatpush1.xpose.msra.mxu0 0.0
        %566 = vmatprep.subr.mxu0 0.0
        %567 = vmatpush1.xpose.msra.mxu0 0.0
        %568 = vmatprep.subr.mxu0 0.0
        %569 = vmatpush1.xpose.msra.mxu0 0.0
        %570 = vmatprep.subr.mxu0 0.0
        %571 = vmatpush1.xpose.msra.mxu0 0.0
        %572 = vmatprep.subr.mxu0 0.0
        %573 = vmatpush1.xpose.msra.mxu0 0.0
        %574 = vmatprep.subr.mxu0 0.0
        %575 = vmatpush1.xpose.msra.mxu0 0.0
        %576 = vmatprep.subr.mxu0 0.0
        %577 = vmatpush1.xpose.msra.mxu0 0.0
        %578 = vmatprep.subr.mxu0 0.0
        %579 = vmatpush1.xpose.msra.mxu0 0.0
        %580 = vmatprep.subr.mxu0 0.0
        %581 = vmatpush1.xpose.msra.mxu0 0.0
        %582 = vmatprep.subr.mxu0 0.0
        %583 = vmatpush1.xpose.msra.mxu0 0.0
        %584 = vmatprep.subr.mxu0 0.0
        %585 = vmatpush1.xpose.msra.mxu0 0.0
        %586 = vmatprep.subr.mxu0 0.0
        %587 = vmatpush1.xpose.msra.mxu0 0.0
        %588 = vmatprep.subr.mxu0 0.0
        %589 = vmatpush1.xpose.msra.mxu0 0.0
        %590 = vmatprep.subr.mxu0 0.0
        %591 = vmatpush1.xpose.msra.mxu0 0.0
        %592 = vmatprep.subr.mxu0 0.0
        %593 = vmatpush1.xpose.msra.mxu0 0.0
        %594 = vmatprep.subr.mxu0 0.0
        %595 = vmatpush1.xpose.msra.mxu0 0.0
        %596 = vmatprep.subr.mxu0 0.0
        %597 = vmatpush1.xpose.msra.mxu0 0.0
        %598 = vmatprep.mubr.f32.mxu0 0.0
        %599 = vmatmul.mubr.f32.gmra.mrb[0].mxu0 %v530
        %v600 = vpop.f32.mrb[0].mxu0
        %v601 = vadd.f32 0.0, %v600
        %v602 = vpop.f32.mrb[0].mxu0
        %603 = vdwg.mxu0
        %v604 = vsel %vm363, %v601, -inf
        %605 = vmax.xlane.f32.xlu0 %v604
        %v606 = vpop.xlane.xlu0 %605
        %v607 = vsub.f32 %v601, %v606
        %v608 = vmul.f32 %v607, 1.442695
        %v609 = vpow.pop %v608
        %v610 = vsel %vm363, %v609, 0.0
        %611 = vadd.xlane.f32.xlu0 %v610
        %v612 = vpop.xlane.xlu0 %611
        %v613 = vrcp.pop %v612
        %v614 = vmul.f32 %v609, %v613
        %615 = vrot.lane.b32.xlu0 %v357, 56
        %v616 = vpop.permute.xlu0 %615
        %v619 = vsel %vm363, %v614, 0
        %621 = vmatprep.subr.mxu0 0.0
        %622 = vmatpush1.msra.mxu0 %v616
        %623 = vmatprep.subr.mxu0 0.0
        %624 = vmatpush1.msra.mxu0 0.0
        %625 = vmatprep.subr.mxu0 0.0
        %626 = vmatpush1.msra.mxu0 0.0
        %627 = vmatprep.subr.mxu0 0.0
        %628 = vmatpush1.msra.mxu0 0.0
        %629 = vmatprep.subr.mxu0 0.0
        %630 = vmatpush1.msra.mxu0 0.0
        %631 = vmatprep.subr.mxu0 0.0
        %632 = vmatpush1.msra.mxu0 0.0
        %633 = vmatprep.subr.mxu0 0.0
        %634 = vmatpush1.msra.mxu0 0.0
        %635 = vmatprep.subr.mxu0 0.0
        %636 = vmatpush1.msra.mxu0 0.0
        %637 = vmatprep.subr.mxu0 0.0
        %638 = vmatpush1.msra.mxu0 0.0
        %639 = vmatprep.subr.mxu0 0.0
        %640 = vmatpush1.msra.mxu0 0.0
        %641 = vmatprep.subr.mxu0 0.0
        %642 = vmatpush1.msra.mxu0 0.0
        %643 = vmatprep.subr.mxu0 0.0
        %644 = vmatpush1.msra.mxu0 0.0
        %645 = vmatprep.subr.mxu0 0.0
        %646 = vmatpush1.msra.mxu0 0.0
        %647 = vmatprep.subr.mxu0 0.0
        %648 = vmatpush1.msra.mxu0 0.0
        %649 = vmatprep.subr.mxu0 0.0
        %650 = vmatpush1.msra.mxu0 0.0
        %651 = vmatprep.subr.mxu0 0.0
        %652 = vmatpush1.msra.mxu0 0.0
        %653 = vmatprep.subr.mxu0 0.0
        %654 = vmatpush1.msra.mxu0 0.0
        %655 = vmatprep.subr.mxu0 0.0
        %656 = vmatpush1.msra.mxu0 0.0
        %657 = vmatprep.subr.mxu0 0.0
        %658 = vmatpush1.msra.mxu0 0.0
        %659 = vmatprep.subr.mxu0 0.0
        %660 = vmatpush1.msra.mxu0 0.0
        %661 = vmatprep.subr.mxu0 0.0
        %662 = vmatpush1.msra.mxu0 0.0
        %663 = vmatprep.subr.mxu0 0.0
        %664 = vmatpush1.msra.mxu0 0.0
        %665 = vmatprep.subr.mxu0 0.0
        %666 = vmatpush1.msra.mxu0 0.0
        %667 = vmatprep.subr.mxu0 0.0
        %668 = vmatpush1.msra.mxu0 0.0
        %669 = vmatprep.subr.mxu0 0.0
        %670 = vmatpush1.msra.mxu0 0.0
        %671 = vmatprep.subr.mxu0 0.0
        %672 = vmatpush1.msra.mxu0 0.0
        %673 = vmatprep.subr.mxu0 0.0
        %674 = vmatpush1.msra.mxu0 0.0
        %675 = vmatprep.subr.mxu0 0.0
        %676 = vmatpush1.msra.mxu0 0.0
        %677 = vmatprep.subr.mxu0 0.0
        %678 = vmatpush1.msra.mxu0 0.0
        %679 = vmatprep.subr.mxu0 0.0
        %680 = vmatpush1.msra.mxu0 0.0
        %681 = vmatprep.subr.mxu0 0.0
        %682 = vmatpush1.msra.mxu0 0.0
        %683 = vmatprep.subr.mxu0 0.0
        %684 = vmatpush1.msra.mxu0 0.0
        %685 = vmatprep.mubr.f32.mxu0 0.0
        %686 = vmatmul.mubr.f32.gmra.mrb[0].mxu0 %v619
        %v687 = vpop.f32.mrb[0].mxu0
        %v688 = vadd.f32 0.0, %v687
        %v689 = vpop.f32.mrb[0].mxu0
        %690 = vdwg.mxu0
        %692 = vrot.lane.b32.xlu0 %v688, 8
        %v693 = vpop.permute.xlu0 %692
        %vm695 = vcmask 130112
        %696 = vst.msk [vmem:[#allocation2] sm:$0xff] %vm695, %v693
        %697 = vrot.lane.b32.xlu0 %v357, 112
        %v698 = vpop.permute.xlu0 %697
        %699 = vrot.lane.b32.xlu0 %v357, 80
        %v700 = vpop.permute.xlu0 %699
        %v701 = vsel %vm363, %v698, 0
        %v703 = vsel %vm363, %v700, 0
        %705 = vmatprep.subr.mxu0 0.0
        %706 = vmatpush1.xpose.msra.mxu0 %v703
        %707 = vmatprep.subr.mxu0 0.0
        %708 = vmatpush1.xpose.msra.mxu0 0.0
        %709 = vmatprep.subr.mxu0 0.0
        %710 = vmatpush1.xpose.msra.mxu0 0.0
        %711 = vmatprep.subr.mxu0 0.0
        %712 = vmatpush1.xpose.msra.mxu0 0.0
        %713 = vmatprep.subr.mxu0 0.0
        %714 = vmatpush1.xpose.msra.mxu0 0.0
        %715 = vmatprep.subr.mxu0 0.0
        %716 = vmatpush1.xpose.msra.mxu0 0.0
        %717 = vmatprep.subr.mxu0 0.0
        %718 = vmatpush1.xpose.msra.mxu0 0.0
        %719 = vmatprep.subr.mxu0 0.0
        %720 = vmatpush1.xpose.msra.mxu0 0.0
        %721 = vmatprep.subr.mxu0 0.0
        %722 = vmatpush1.xpose.msra.mxu0 0.0
        %723 = vmatprep.subr.mxu0 0.0
        %724 = vmatpush1.xpose.msra.mxu0 0.0
        %725 = vmatprep.subr.mxu0 0.0
        %726 = vmatpush1.xpose.msra.mxu0 0.0
        %727 = vmatprep.subr.mxu0 0.0
        %728 = vmatpush1.xpose.msra.mxu0 0.0
        %729 = vmatprep.subr.mxu0 0.0
        %730 = vmatpush1.xpose.msra.mxu0 0.0
        %731 = vmatprep.subr.mxu0 0.0
        %732 = vmatpush1.xpose.msra.mxu0 0.0
        %733 = vmatprep.subr.mxu0 0.0
        %734 = vmatpush1.xpose.msra.mxu0 0.0
        %735 = vmatprep.subr.mxu0 0.0
        %736 = vmatpush1.xpose.msra.mxu0 0.0
        %737 = vmatprep.subr.mxu0 0.0
        %738 = vmatpush1.xpose.msra.mxu0 0.0
        %739 = vmatprep.subr.mxu0 0.0
        %740 = vmatpush1.xpose.msra.mxu0 0.0
        %741 = vmatprep.subr.mxu0 0.0
        %742 = vmatpush1.xpose.msra.mxu0 0.0
        %743 = vmatprep.subr.mxu0 0.0
        %744 = vmatpush1.xpose.msra.mxu0 0.0
        %745 = vmatprep.subr.mxu0 0.0
        %746 = vmatpush1.xpose.msra.mxu0 0.0
        %747 = vmatprep.subr.mxu0 0.0
        %748 = vmatpush1.xpose.msra.mxu0 0.0
        %749 = vmatprep.subr.mxu0 0.0
        %750 = vmatpush1.xpose.msra.mxu0 0.0
        %751 = vmatprep.subr.mxu0 0.0
        %752 = vmatpush1.xpose.msra.mxu0 0.0
        %753 = vmatprep.subr.mxu0 0.0
        %754 = vmatpush1.xpose.msra.mxu0 0.0
        %755 = vmatprep.subr.mxu0 0.0
        %756 = vmatpush1.xpose.msra.mxu0 0.0
        %757 = vmatprep.subr.mxu0 0.0
        %758 = vmatpush1.xpose.msra.mxu0 0.0
        %759 = vmatprep.subr.mxu0 0.0
        %760 = vmatpush1.xpose.msra.mxu0 0.0
        %761 = vmatprep.subr.mxu0 0.0
        %762 = vmatpush1.xpose.msra.mxu0 0.0
        %763 = vmatprep.subr.mxu0 0.0
        %764 = vmatpush1.xpose.msra.mxu0 0.0
        %765 = vmatprep.subr.mxu0 0.0
        %766 = vmatpush1.xpose.msra.mxu0 0.0
        %767 = vmatprep.subr.mxu0 0.0
        %768 = vmatpush1.xpose.msra.mxu0 0.0
        %769 = vmatprep.mubr.f32.mxu0 0.0
        %770 = vmatmul.mubr.f32.gmra.mrb[0].mxu0 %v701
        %v771 = vpop.f32.mrb[0].mxu0
        %v772 = vadd.f32 0.0, %v771
        %v773 = vpop.f32.mrb[0].mxu0
        %774 = vdwg.mxu0
        %v775 = vsel %vm363, %v772, -inf
        %776 = vmax.xlane.f32.xlu0 %v775
        %v777 = vpop.xlane.xlu0 %776
        %v778 = vsub.f32 %v772, %v777
        %v779 = vmul.f32 %v778, 1.442695
        %v780 = vpow.pop %v779
        %v781 = vsel %vm363, %v780, 0.0
        %782 = vadd.xlane.f32.xlu0 %v781
        %v783 = vpop.xlane.xlu0 %782
        %v784 = vrcp.pop %v783
        %v785 = vmul.f32 %v780, %v784
        %786 = vrot.lane.b32.xlu0 %v357, 48
        %v787 = vpop.permute.xlu0 %786
        %v790 = vsel %vm363, %v785, 0
        %792 = vmatprep.subr.mxu0 0.0
        %793 = vmatpush1.msra.mxu0 %v787
        %794 = vmatprep.subr.mxu0 0.0
        %795 = vmatpush1.msra.mxu0 0.0
        %796 = vmatprep.subr.mxu0 0.0
        %797 = vmatpush1.msra.mxu0 0.0
        %798 = vmatprep.subr.mxu0 0.0
        %799 = vmatpush1.msra.mxu0 0.0
        %800 = vmatprep.subr.mxu0 0.0
        %801 = vmatpush1.msra.mxu0 0.0
        %802 = vmatprep.subr.mxu0 0.0
        %803 = vmatpush1.msra.mxu0 0.0
        %804 = vmatprep.subr.mxu0 0.0
        %805 = vmatpush1.msra.mxu0 0.0
        %806 = vmatprep.subr.mxu0 0.0
        %807 = vmatpush1.msra.mxu0 0.0
        %808 = vmatprep.subr.mxu0 0.0
        %809 = vmatpush1.msra.mxu0 0.0
        %810 = vmatprep.subr.mxu0 0.0
        %811 = vmatpush1.msra.mxu0 0.0
        %812 = vmatprep.subr.mxu0 0.0
        %813 = vmatpush1.msra.mxu0 0.0
        %814 = vmatprep.subr.mxu0 0.0
        %815 = vmatpush1.msra.mxu0 0.0
        %816 = vmatprep.subr.mxu0 0.0
        %817 = vmatpush1.msra.mxu0 0.0
        %818 = vmatprep.subr.mxu0 0.0
        %819 = vmatpush1.msra.mxu0 0.0
        %820 = vmatprep.subr.mxu0 0.0
        %821 = vmatpush1.msra.mxu0 0.0
        %822 = vmatprep.subr.mxu0 0.0
        %823 = vmatpush1.msra.mxu0 0.0
        %824 = vmatprep.subr.mxu0 0.0
        %825 = vmatpush1.msra.mxu0 0.0
        %826 = vmatprep.subr.mxu0 0.0
        %827 = vmatpush1.msra.mxu0 0.0
        %828 = vmatprep.subr.mxu0 0.0
        %829 = vmatpush1.msra.mxu0 0.0
        %830 = vmatprep.subr.mxu0 0.0
        %831 = vmatpush1.msra.mxu0 0.0
        %832 = vmatprep.subr.mxu0 0.0
        %833 = vmatpush1.msra.mxu0 0.0
        %834 = vmatprep.subr.mxu0 0.0
        %835 = vmatpush1.msra.mxu0 0.0
        %836 = vmatprep.subr.mxu0 0.0
        %837 = vmatpush1.msra.mxu0 0.0
        %838 = vmatprep.subr.mxu0 0.0
        %839 = vmatpush1.msra.mxu0 0.0
        %840 = vmatprep.subr.mxu0 0.0
        %841 = vmatpush1.msra.mxu0 0.0
        %842 = vmatprep.subr.mxu0 0.0
        %843 = vmatpush1.msra.mxu0 0.0
        %844 = vmatprep.subr.mxu0 0.0
        %845 = vmatpush1.msra.mxu0 0.0
        %846 = vmatprep.subr.mxu0 0.0
        %847 = vmatpush1.msra.mxu0 0.0
        %848 = vmatprep.subr.mxu0 0.0
        %849 = vmatpush1.msra.mxu0 0.0
        %850 = vmatprep.subr.mxu0 0.0
        %851 = vmatpush1.msra.mxu0 0.0
        %852 = vmatprep.subr.mxu0 0.0
        %853 = vmatpush1.msra.mxu0 0.0
        %854 = vmatprep.subr.mxu0 0.0
        %855 = vmatpush1.msra.mxu0 0.0
        %856 = vmatprep.mubr.f32.mxu0 0.0
        %857 = vmatmul.mubr.f32.gmra.mrb[0].mxu0 %v790
        %v858 = vpop.f32.mrb[0].mxu0
        %v859 = vadd.f32 0.0, %v858
        %v860 = vpop.f32.mrb[0].mxu0
        %861 = vdwg.mxu0
        %863 = vrot.lane.b32.xlu0 %v859, 16
        %v864 = vpop.permute.xlu0 %863
        %vm866 = vcmask 195712
        %867 = vst.msk [vmem:[#allocation2] sm:$0xff] %vm866, %v864
        %868 = vrot.lane.b32.xlu0 %v357, 104
        %v869 = vpop.permute.xlu0 %868
        %870 = vrot.lane.b32.xlu0 %v357, 72
        %v871 = vpop.permute.xlu0 %870
        %v872 = vsel %vm363, %v869, 0
        %v874 = vsel %vm363, %v871, 0
        %876 = vmatprep.subr.mxu0 0.0
        %877 = vmatpush1.xpose.msra.mxu0 %v874
        %878 = vmatprep.subr.mxu0 0.0
        %879 = vmatpush1.xpose.msra.mxu0 0.0
        %880 = vmatprep.subr.mxu0 0.0
        %881 = vmatpush1.xpose.msra.mxu0 0.0
        %882 = vmatprep.subr.mxu0 0.0
        %883 = vmatpush1.xpose.msra.mxu0 0.0
        %884 = vmatprep.subr.mxu0 0.0
        %885 = vmatpush1.xpose.msra.mxu0 0.0
        %886 = vmatprep.subr.mxu0 0.0
        %887 = vmatpush1.xpose.msra.mxu0 0.0
        %888 = vmatprep.subr.mxu0 0.0
        %889 = vmatpush1.xpose.msra.mxu0 0.0
        %890 = vmatprep.subr.mxu0 0.0
        %891 = vmatpush1.xpose.msra.mxu0 0.0
        %892 = vmatprep.subr.mxu0 0.0
        %893 = vmatpush1.xpose.msra.mxu0 0.0
        %894 = vmatprep.subr.mxu0 0.0
        %895 = vmatpush1.xpose.msra.mxu0 0.0
        %896 = vmatprep.subr.mxu0 0.0
        %897 = vmatpush1.xpose.msra.mxu0 0.0
        %898 = vmatprep.subr.mxu0 0.0
        %899 = vmatpush1.xpose.msra.mxu0 0.0
        %900 = vmatprep.subr.mxu0 0.0
        %901 = vmatpush1.xpose.msra.mxu0 0.0
        %902 = vmatprep.subr.mxu0 0.0
        %903 = vmatpush1.xpose.msra.mxu0 0.0
        %904 = vmatprep.subr.mxu0 0.0
        %905 = vmatpush1.xpose.msra.mxu0 0.0
        %906 = vmatprep.subr.mxu0 0.0
        %907 = vmatpush1.xpose.msra.mxu0 0.0
        %908 = vmatprep.subr.mxu0 0.0
        %909 = vmatpush1.xpose.msra.mxu0 0.0
        %910 = vmatprep.subr.mxu0 0.0
        %911 = vmatpush1.xpose.msra.mxu0 0.0
        %912 = vmatprep.subr.mxu0 0.0
        %913 = vmatpush1.xpose.msra.mxu0 0.0
        %914 = vmatprep.subr.mxu0 0.0
        %915 = vmatpush1.xpose.msra.mxu0 0.0
        %916 = vmatprep.subr.mxu0 0.0
        %917 = vmatpush1.xpose.msra.mxu0 0.0
        %918 = vmatprep.subr.mxu0 0.0
        %919 = vmatpush1.xpose.msra.mxu0 0.0
        %920 = vmatprep.subr.mxu0 0.0
        %921 = vmatpush1.xpose.msra.mxu0 0.0
        %922 = vmatprep.subr.mxu0 0.0
        %923 = vmatpush1.xpose.msra.mxu0 0.0
        %924 = vmatprep.subr.mxu0 0.0
        %925 = vmatpush1.xpose.msra.mxu0 0.0
        %926 = vmatprep.subr.mxu0 0.0
        %927 = vmatpush1.xpose.msra.mxu0 0.0
        %928 = vmatprep.subr.mxu0 0.0
        %929 = vmatpush1.xpose.msra.mxu0 0.0
        %930 = vmatprep.subr.mxu0 0.0
        %931 = vmatpush1.xpose.msra.mxu0 0.0
        %932 = vmatprep.subr.mxu0 0.0
        %933 = vmatpush1.xpose.msra.mxu0 0.0
        %934 = vmatprep.subr.mxu0 0.0
        %935 = vmatpush1.xpose.msra.mxu0 0.0
        %936 = vmatprep.subr.mxu0 0.0
        %937 = vmatpush1.xpose.msra.mxu0 0.0
        %938 = vmatprep.subr.mxu0 0.0
        %939 = vmatpush1.xpose.msra.mxu0 0.0
        %940 = vmatprep.mubr.f32.mxu0 0.0
        %941 = vmatmul.mubr.f32.gmra.mrb[0].mxu0 %v872
        %v942 = vpop.f32.mrb[0].mxu0
        %v943 = vadd.f32 0.0, %v942
        %v944 = vpop.f32.mrb[0].mxu0
        %945 = vdwg.mxu0
        %v946 = vsel %vm363, %v943, -inf
        %947 = vmax.xlane.f32.xlu0 %v946
        %v948 = vpop.xlane.xlu0 %947
        %v949 = vsub.f32 %v943, %v948
        %v950 = vmul.f32 %v949, 1.442695
        %v951 = vpow.pop %v950
        %v952 = vsel %vm363, %v951, 0.0
        %953 = vadd.xlane.f32.xlu0 %v952
        %v954 = vpop.xlane.xlu0 %953
        %v955 = vrcp.pop %v954
        %v956 = vmul.f32 %v951, %v955
        %957 = vrot.lane.b32.xlu0 %v357, 40
        %v958 = vpop.permute.xlu0 %957
        %v961 = vsel %vm363, %v956, 0
        %963 = vmatprep.subr.mxu0 0.0
        %964 = vmatpush1.msra.mxu0 %v958
        %965 = vmatprep.subr.mxu0 0.0
        %966 = vmatpush1.msra.mxu0 0.0
        %967 = vmatprep.subr.mxu0 0.0
        %968 = vmatpush1.msra.mxu0 0.0
        %969 = vmatprep.subr.mxu0 0.0
        %970 = vmatpush1.msra.mxu0 0.0
        %971 = vmatprep.subr.mxu0 0.0
        %972 = vmatpush1.msra.mxu0 0.0
        %973 = vmatprep.subr.mxu0 0.0
        %974 = vmatpush1.msra.mxu0 0.0
        %975 = vmatprep.subr.mxu0 0.0
        %976 = vmatpush1.msra.mxu0 0.0
        %977 = vmatprep.subr.mxu0 0.0
        %978 = vmatpush1.msra.mxu0 0.0
        %979 = vmatprep.subr.mxu0 0.0
        %980 = vmatpush1.msra.mxu0 0.0
        %981 = vmatprep.subr.mxu0 0.0
        %982 = vmatpush1.msra.mxu0 0.0
        %983 = vmatprep.subr.mxu0 0.0
        %984 = vmatpush1.msra.mxu0 0.0
        %985 = vmatprep.subr.mxu0 0.0
        %986 = vmatpush1.msra.mxu0 0.0
        %987 = vmatprep.subr.mxu0 0.0
        %988 = vmatpush1.msra.mxu0 0.0
        %989 = vmatprep.subr.mxu0 0.0
        %990 = vmatpush1.msra.mxu0 0.0
        %991 = vmatprep.subr.mxu0 0.0
        %992 = vmatpush1.msra.mxu0 0.0
        %993 = vmatprep.subr.mxu0 0.0
        %994 = vmatpush1.msra.mxu0 0.0
        %995 = vmatprep.subr.mxu0 0.0
        %996 = vmatpush1.msra.mxu0 0.0
        %997 = vmatprep.subr.mxu0 0.0
        %998 = vmatpush1.msra.mxu0 0.0
        %999 = vmatprep.subr.mxu0 0.0
        %1000 = vmatpush1.msra.mxu0 0.0
        %1001 = vmatprep.subr.mxu0 0.0
        %1002 = vmatpush1.msra.mxu0 0.0
        %1003 = vmatprep.subr.mxu0 0.0
        %1004 = vmatpush1.msra.mxu0 0.0
        %1005 = vmatprep.subr.mxu0 0.0
        %1006 = vmatpush1.msra.mxu0 0.0
        %1007 = vmatprep.subr.mxu0 0.0
        %1008 = vmatpush1.msra.mxu0 0.0
        %1009 = vmatprep.subr.mxu0 0.0
        %1010 = vmatpush1.msra.mxu0 0.0
        %1011 = vmatprep.subr.mxu0 0.0
        %1012 = vmatpush1.msra.mxu0 0.0
        %1013 = vmatprep.subr.mxu0 0.0
        %1014 = vmatpush1.msra.mxu0 0.0
        %1015 = vmatprep.subr.mxu0 0.0
        %1016 = vmatpush1.msra.mxu0 0.0
        %1017 = vmatprep.subr.mxu0 0.0
        %1018 = vmatpush1.msra.mxu0 0.0
        %1019 = vmatprep.subr.mxu0 0.0
        %1020 = vmatpush1.msra.mxu0 0.0
        %1021 = vmatprep.subr.mxu0 0.0
        %1022 = vmatpush1.msra.mxu0 0.0
        %1023 = vmatprep.subr.mxu0 0.0
        %1024 = vmatpush1.msra.mxu0 0.0
        %1025 = vmatprep.subr.mxu0 0.0
        %1026 = vmatpush1.msra.mxu0 0.0
        %1027 = vmatprep.mubr.f32.mxu0 0.0
        %1028 = vmatmul.mubr.f32.gmra.mrb[0].mxu0 %v961
        %v1029 = vpop.f32.mrb[0].mxu0
        %v1030 = vadd.f32 0.0, %v1029
        %v1031 = vpop.f32.mrb[0].mxu0
        %1032 = vdwg.mxu0
        %1034 = vrot.lane.b32.xlu0 %v1030, 24
        %v1035 = vpop.permute.xlu0 %1034
        %vm1037 = vcmask 261312
        %1038 = vst.msk [vmem:[#allocation2] sm:$0xff] %vm1037, %v1035
        %v1039 = vld [vmem:[#allocation2] sm:$0xff]
        %v1041 = vlaneseq
        %v1042 = vshrl.u32 %v1041, 7
        %v1043 = vsub.s32 0, %v1042
        %v1044 = vrot.slane %v278, %v1043
        %v1047 = vsel %vm286, %v1039, 0
        %1049 = vmatprep.subr.mxu0 0.0
        %1050 = vmatpush1.msra.mxu0 %v273
        %1051 = vmatprep.subr.mxu0 0.0
        %1052 = vmatpush1.msra.mxu0 %v274
        %1053 = vmatprep.subr.mxu0 0.0
        %1054 = vmatpush1.msra.mxu0 %v275
        %1055 = vmatprep.subr.mxu0 0.0
        %1056 = vmatpush1.msra.mxu0 %v276
        %1057 = vmatprep.subr.mxu0 0.0
        %1058 = vmatpush1.msra.mxu0 0.0
        %1059 = vmatprep.subr.mxu0 0.0
        %1060 = vmatpush1.msra.mxu0 0.0
        %1061 = vmatprep.subr.mxu0 0.0
        %1062 = vmatpush1.msra.mxu0 0.0
        %1063 = vmatprep.subr.mxu0 0.0
        %1064 = vmatpush1.msra.mxu0 0.0
        %1065 = vmatprep.subr.mxu0 0.0
        %1066 = vmatpush1.msra.mxu0 0.0
        %1067 = vmatprep.subr.mxu0 0.0
        %1068 = vmatpush1.msra.mxu0 0.0
        %1069 = vmatprep.subr.mxu0 0.0
        %1070 = vmatpush1.msra.mxu0 0.0
        %1071 = vmatprep.subr.mxu0 0.0
        %1072 = vmatpush1.msra.mxu0 0.0
        %1073 = vmatprep.subr.mxu0 0.0
        %1074 = vmatpush1.msra.mxu0 0.0
        %1075 = vmatprep.subr.mxu0 0.0
        %1076 = vmatpush1.msra.mxu0 0.0
        %1077 = vmatprep.subr.mxu0 0.0
        %1078 = vmatpush1.msra.mxu0 0.0
        %1079 = vmatprep.subr.mxu0 0.0
        %1080 = vmatpush1.msra.mxu0 0.0
        %1081 = vmatprep.subr.mxu0 0.0
        %1082 = vmatpush1.msra.mxu0 0.0
        %1083 = vmatprep.subr.mxu0 0.0
        %1084 = vmatpush1.msra.mxu0 0.0
        %1085 = vmatprep.subr.mxu0 0.0
        %1086 = vmatpush1.msra.mxu0 0.0
        %1087 = vmatprep.subr.mxu0 0.0
        %1088 = vmatpush1.msra.mxu0 0.0
        %1089 = vmatprep.subr.mxu0 0.0
        %1090 = vmatpush1.msra.mxu0 0.0
        %1091 = vmatprep.subr.mxu0 0.0
        %1092 = vmatpush1.msra.mxu0 0.0
        %1093 = vmatprep.subr.mxu0 0.0
        %1094 = vmatpush1.msra.mxu0 0.0
        %1095 = vmatprep.subr.mxu0 0.0
        %1096 = vmatpush1.msra.mxu0 0.0
        %1097 = vmatprep.subr.mxu0 0.0
        %1098 = vmatpush1.msra.mxu0 0.0
        %1099 = vmatprep.subr.mxu0 0.0
        %1100 = vmatpush1.msra.mxu0 0.0
        %1101 = vmatprep.subr.mxu0 0.0
        %1102 = vmatpush1.msra.mxu0 0.0
        %1103 = vmatprep.subr.mxu0 0.0
        %1104 = vmatpush1.msra.mxu0 0.0
        %1105 = vmatprep.subr.mxu0 0.0
        %1106 = vmatpush1.msra.mxu0 0.0
        %1107 = vmatprep.subr.mxu0 0.0
        %1108 = vmatpush1.msra.mxu0 0.0
        %1109 = vmatprep.subr.mxu0 0.0
        %1110 = vmatpush1.msra.mxu0 0.0
        %1111 = vmatprep.subr.mxu0 0.0
        %1112 = vmatpush1.msra.mxu0 0.0
        %1113 = vmatprep.mubr.f32.mxu0 0.0
        %1114 = vmatmul.mubr.f32.gmra.mrb[0].mxu0 %v1047
        %v1115 = vpop.f32.mrb[0].mxu0
        %v1116 = vadd.f32 %v1044, %v1115
        %v1117 = vpop.f32.mrb[0].mxu0
        %1118 = vdwg.mxu0
        %1119 = vst.msk [vmem:[%s268] sm:$0xff] %vm286, %v1116
        %s1120 = sand.u32 %s141, 1
        %s1121 = scalar_lea.sflag [#allocation5], %s1120
        %s1122 = sand.u32 %s141, 1
        %s1123 = smul.addr %s1122, 8
        %s1124 = scalar_lea.vmem [#allocation9], %s1123
        // Predicated region
        $region53: #{tpu_custom_call.1} parent=39 // pred_check
          %p1125 = pneg %p151
        $region54: #{tpu_custom_call.1} parent=39 // pred_check_branch
          %1127 = sbr.rel (%p1125) target = $region56
        $region55: #{tpu_custom_call.1} parent=39 // pred_region
          %s1129 = ssub.s32 128, 128
          %1130 = vsyncadd %s1121, %s1129
          %s1131 = smul.addr %s23, 128
          %s1132 = scalar_lea.hbm %s5, %s1131
          %s1134 = sshll.u32 %s1124, 4
          %s1135 = int_to_ptr.vmem [resolvable:$true] %s1134
          %1137 = dma.vmem_to_hbm [thread:$0]  %s1135, 128, %s1132, %s1121
        $region56: #{tpu_custom_call.1} parent=39 // pred_fallthru
          _
      $region40: #{tpu_custom_call.1} parent=5 // pred_fallthru
        _
      %p1138 = scmp.le.s32.totalorder 2, %s18
      // Predicated region
      $region57: #{tpu_custom_call.1} parent=5 // pred_check
        %p1139 = pneg %p1138
      $region58: #{tpu_custom_call.1} parent=5 // pred_check_branch
        %1141 = sbr.rel (%p1139) target = $region60
      $region59: #{tpu_custom_call.1} parent=5 // pred_region
        %s1142 = ssub.s32 %s18, 2
        // Predicated region
        $region61: #{tpu_custom_call.1} parent=59 // pred_check
          %p1143 = pneg %p157
        $region62: #{tpu_custom_call.1} parent=59 // pred_check_branch
          %1145 = sbr.rel (%p1143) target = $region64
        $region63: #{tpu_custom_call.1} parent=59 // pred_region
          %s1146 = sand.u32 %s142, 1
          %s1147 = scalar_lea.sflag [#allocation5], %s1146
          %s1148 = sand.u32 %s142, 1
          %s1149 = smul.addr %s1148, 8
          %s1150 = scalar_lea.vmem [#allocation9], %s1149
          %1151 = dma.done %s1147, 128
        $region64: #{tpu_custom_call.1} parent=59 // pred_fallthru
          _
      $region60: #{tpu_custom_call.1} parent=5 // pred_fallthru
        _
    $region6: #{tpu_custom_call.1} parent=1 // loop_footer
      %s22 = sadd.s32 1, %s18
    $region7: #{tpu_custom_call.1} parent=1 // loop_footer_branch
      %17 = sbr.rel target = $region3
    $region8: #{tpu_custom_call.1} parent=1 // loop_exit
      _
    %1152 = vsyncpa [#allocation4], 1
    %s1153 = scalar_lea.sflag [#allocation4], 1
    %1154 = vsyncpa %s1153, 1
    %1155 = vsyncpa [#allocation7], 1
    %1156 = vsyncpa [#allocation5], 1
    %s1157 = scalar_lea.sflag [#allocation5], 1
    %1158 = vsyncpa %s1157, 1

</llo_original>
